<compile_context>
chip_gen: v5e
topology: v5e:2x2
jax: 0.10.0
libtpu: 0.0.40
codegen_flags: <defaults>
</compile_context>

<pallas_src>
import jax
import jax.numpy as jnp
from jax.experimental import pallas as pl
from jax.experimental.pallas import tpu as pltpu


# ----------------------------------------------------------------------------- helpers
def _round_up(x, m):
    return (x + m - 1) // m * m


def _pad_to(x, shape):
    pads = [(0, t - s) for s, t in zip(x.shape, shape)]
    return jnp.pad(x, pads)


# ----------------------------------------------------------------------------- kernels
def _make_spmm_postw_kernel(apply_relu):
    """out_tile = maybe_relu((sum_k A_tile @ B_tile) @ W + bias)."""

    def kernel(a_ref, b_ref, w_ref, bias_ref, o_ref, acc_ref):
        k = pl.program_id(1)

        @pl.when(k == 0)
        def _():
            acc_ref[...] = jnp.zeros_like(acc_ref)

        acc_ref[...] += jnp.dot(a_ref[...], b_ref[...],
                                preferred_element_type=jnp.float32)

        @pl.when(k == pl.num_programs(1) - 1)
        def _():
            y = jnp.dot(acc_ref[...].astype(jnp.bfloat16), w_ref[...],
                        preferred_element_type=jnp.float32) + bias_ref[...]
            if apply_relu:
                y = jnp.maximum(y, 0.0)
            o_ref[...] = y.astype(o_ref.dtype)

    return kernel


def _make_spmm_bias_kernel(apply_relu):
    """out_tile = maybe_relu((sum_k A_tile @ B_tile) + bias)."""

    def kernel(a_ref, b_ref, bias_ref, o_ref, acc_ref):
        k = pl.program_id(1)

        @pl.when(k == 0)
        def _():
            acc_ref[...] = jnp.zeros_like(acc_ref)

        acc_ref[...] += jnp.dot(a_ref[...], b_ref[...],
                                preferred_element_type=jnp.float32)

        @pl.when(k == pl.num_programs(1) - 1)
        def _():
            y = acc_ref[...] + bias_ref[...]
            if apply_relu:
                y = jnp.maximum(y, 0.0)
            o_ref[...] = y.astype(o_ref.dtype)

    return kernel


def _dense_kernel(x_ref, w_ref, o_ref):
    """out_tile = X_tile @ W (feature-space projection, no bias)."""
    o_ref[...] = jnp.dot(x_ref[...], w_ref[...],
                         preferred_element_type=jnp.float32).astype(o_ref.dtype)


# ----------------------------------------------------------------------------- pallas_call wrappers
def _spmm_postw(a, b, w, bias, *, apply_relu, out_dtype, tile_n, vmem_limit_bytes):
    n = a.shape[0]
    fb = b.shape[1]
    fo = w.shape[1]
    grid = (n // tile_n, n // tile_n)
    return pl.pallas_call(
        _make_spmm_postw_kernel(apply_relu),
        out_shape=jax.ShapeDtypeStruct((n, fo), out_dtype),
        grid_spec=pltpu.PrefetchScalarGridSpec(
            num_scalar_prefetch=0,
            grid=grid,
            in_specs=[
                pl.BlockSpec((tile_n, tile_n), lambda i, k: (i, k)),   # A row/col tile
                pl.BlockSpec((tile_n, fb), lambda i, k: (k, 0)),       # feature K tile
                pl.BlockSpec((fb, fo), lambda i, k: (0, 0)),           # W (resident)
                pl.BlockSpec((1, fo), lambda i, k: (0, 0)),            # bias (resident)
            ],
            out_specs=pl.BlockSpec((tile_n, fo), lambda i, k: (i, 0)),
            scratch_shapes=[pltpu.VMEM((tile_n, fb), jnp.float32)],
        ),
        compiler_params=pltpu.CompilerParams(
            dimension_semantics=("parallel", "arbitrary"),
            vmem_limit_bytes=vmem_limit_bytes),
    )(a, b, w, bias)


def _spmm_bias(a, b, bias, *, apply_relu, out_dtype, tile_n, vmem_limit_bytes):
    n = a.shape[0]
    fo = b.shape[1]
    grid = (n // tile_n, n // tile_n)
    return pl.pallas_call(
        _make_spmm_bias_kernel(apply_relu),
        out_shape=jax.ShapeDtypeStruct((n, fo), out_dtype),
        grid_spec=pltpu.PrefetchScalarGridSpec(
            num_scalar_prefetch=0,
            grid=grid,
            in_specs=[
                pl.BlockSpec((tile_n, tile_n), lambda i, k: (i, k)),
                pl.BlockSpec((tile_n, fo), lambda i, k: (k, 0)),
                pl.BlockSpec((1, fo), lambda i, k: (0, 0)),
            ],
            out_specs=pl.BlockSpec((tile_n, fo), lambda i, k: (i, 0)),
            scratch_shapes=[pltpu.VMEM((tile_n, fo), jnp.float32)],
        ),
        compiler_params=pltpu.CompilerParams(
            dimension_semantics=("parallel", "arbitrary"),
            vmem_limit_bytes=vmem_limit_bytes),
    )(a, b, bias)


def _dense_matmul(x, w, *, out_dtype, tile_n, vmem_limit_bytes):
    n, fk = x.shape
    fo = w.shape[1]
    return pl.pallas_call(
        _dense_kernel,
        out_shape=jax.ShapeDtypeStruct((n, fo), out_dtype),
        grid_spec=pltpu.PrefetchScalarGridSpec(
            num_scalar_prefetch=0,
            grid=(n // tile_n,),
            in_specs=[
                pl.BlockSpec((tile_n, fk), lambda i: (i, 0)),
                pl.BlockSpec((fk, fo), lambda i: (0, 0)),
            ],
            out_specs=pl.BlockSpec((tile_n, fo), lambda i: (i, 0)),
        ),
        compiler_params=pltpu.CompilerParams(
            dimension_semantics=("parallel",),
            vmem_limit_bytes=vmem_limit_bytes),
    )(x, w)


# ----------------------------------------------------------------------------- GCN forward
def gcn_forward(a_hat, x, w1, b1, w2, b2, w3, b3, *,
                tile_n=128, vmem_limit_bytes=32 << 20):
    """h = relu(A@X@W1+b1); h = relu(A@h@W2+b2); out = A@h@W3+b3."""
    assert tile_n % 128 == 0
    n, f_in = x.shape
    h1, h2, c = w1.shape[1], w2.shape[1], w3.shape[1]

    n_p = _round_up(n, tile_n)
    f_in_p = _round_up(f_in, 128)
    h1_p = _round_up(h1, 128)
    h2_p = _round_up(h2, 128)
    c_p = _round_up(c, 128)

    bf16 = jnp.bfloat16
    a_p = _pad_to(a_hat, (n_p, n_p)).astype(bf16)
    x_p = _pad_to(x, (n_p, f_in_p)).astype(bf16)
    w1_p = _pad_to(w1, (f_in_p, h1_p)).astype(bf16)
    w2_p = _pad_to(w2, (h1_p, h2_p)).astype(bf16)
    w3_p = _pad_to(w3, (h2_p, c_p)).astype(bf16)
    b1_p = _pad_to(b1.reshape(1, -1), (1, h1_p)).astype(jnp.float32)
    b2_p = _pad_to(b2.reshape(1, -1), (1, h2_p)).astype(jnp.float32)
    b3_p = _pad_to(b3.reshape(1, -1), (1, c_p)).astype(jnp.float32)

    common = dict(tile_n=tile_n, vmem_limit_bytes=vmem_limit_bytes)

    # layer 1: relu((A @ X) @ W1 + b1)  -- contract A over the narrow input width
    h = _spmm_postw(a_p, x_p, w1_p, b1_p, apply_relu=True, out_dtype=bf16, **common)
    # layer 2: relu(A @ (h1 @ W2) + b2) -- project to the narrower width first
    hw = _dense_matmul(h, w2_p, out_dtype=bf16, **common)
    h = _spmm_bias(a_p, hw, b2_p, apply_relu=True, out_dtype=bf16, **common)
    # layer 3: (A @ h2) @ W3 + b3       -- no activation, f32 logits out
    out = _spmm_postw(a_p, h, w3_p, b3_p, apply_relu=False,
                      out_dtype=jnp.float32, **common)
    return out[:n, :c]


# ----------------------------------------------------------------------------- graph / param setup
def build_normalized_adjacency(adj):
    """adj[v, u] = 1.0 iff there is an edge u -> v.
    Returns D_in^{-1/2} A D_out^{-1/2} with degrees clamped to >= 1
    (DGL GraphConv norm='both', allow_zero_in_degree=True)."""
    out_deg = jnp.maximum(adj.sum(axis=0), 1.0)   # per source node u
    in_deg = jnp.maximum(adj.sum(axis=1), 1.0)    # per destination node v
    return (in_deg[:, None] ** -0.5) * adj * (out_deg[None, :] ** -0.5)


def xavier_uniform(key, shape):
    fan_in, fan_out = shape
    limit = (6.0 / (fan_in + fan_out)) ** 0.5
    return jax.random.uniform(key, shape, jnp.float32, -limit, limit)


# ----------------------------------------------------------------------------- test
if __name__ == "__main__":
    # Small shapes consistent with the module (module-default hidden sizes).
    N = 256
    IN_FEATS = 16
    H1 = 256
    H2 = 128
    NUM_CLASSES = 8

    key = jax.random.PRNGKey(0)
    k_adj, k_x, k1, k2, k3 = jax.random.split(key, 5)

    # Deterministic random directed graph (zero in-degree nodes are allowed).
    adj = (jax.random.uniform(k_adj, (N, N)) < 0.1).astype(jnp.float32)
    a_hat = build_normalized_adjacency(adj)
    features = jax.random.normal(k_x, (N, IN_FEATS), jnp.float32)

    # GraphConv params: xavier_uniform weights, zero biases (DGL defaults).
    w1 = xavier_uniform(k1, (IN_FEATS, H1))
    b1 = jnp.zeros((H1,), jnp.float32)
    w2 = xavier_uniform(k2, (H1, H2))
    b2 = jnp.zeros((H2,), jnp.float32)
    w3 = xavier_uniform(k3, (H2, NUM_CLASSES))
    b3 = jnp.zeros((NUM_CLASSES,), jnp.float32)

    out = gcn_forward(a_hat, features, w1, b1, w2, b2, w3, b3)
    out = jax.block_until_ready(out)
    assert out.shape == (N, NUM_CLASSES)

    # --- matched-precision reference (bf16 operands, f32 accumulation, same
    #     operation order as the kernels) --------------------------------------
    bf16 = jnp.bfloat16

    def bdot(a, b):
        return jnp.dot(a.astype(bf16), b.astype(bf16),
                       preferred_element_type=jnp.float32)

    ax = bdot(a_hat, features)
    h_m = jnp.maximum(bdot(ax, w1) + b1, 0.0).astype(bf16)
    hw_m = bdot(h_m, w2).astype(bf16)
    h_m = jnp.maximum(bdot(a_hat, hw_m) + b2, 0.0).astype(bf16)
    ref_matched = bdot(bdot(a_hat, h_m), w3) + b3
    assert jnp.allclose(out, ref_matched, atol=5e-3, rtol=5e-3)

    # --- full-f32 reference (module semantics), loose tol due to bf16 inputs ---
    h = jnp.maximum(a_hat @ features @ w1 + b1, 0.0)
    h = jnp.maximum(a_hat @ h @ w2 + b2, 0.0)
    ref_f32 = a_hat @ h @ w3 + b3
    assert jnp.allclose(out, ref_f32, atol=5e-2, rtol=5e-2)

    print("KERNEL_OK")
</pallas_src>

<mosaic_0001>
module attributes {stable_mosaic.version = 11 : i64} {
  func.func @kernel(%arg0: i32, %arg1: i32, %arg2: memref<128x128xbf16, #tpu.memory_space<vmem>>, %arg3: memref<128x128xbf16, #tpu.memory_space<vmem>>, %arg4: memref<128x256xbf16, #tpu.memory_space<vmem>>, %arg5: memref<1x256xf32, #tpu.memory_space<vmem>>, %arg6: memref<128x256xbf16, #tpu.memory_space<vmem>>, %arg7: memref<128x128xf32, #tpu.memory_space<vmem>>) attributes {dimension_semantics = [#tpu.dimension_semantics<parallel>, #tpu.dimension_semantics<arbitrary>], iteration_bounds = array<i64: 2, 2>, scalar_prefetch = 0 : i64, scratch_operands = 1 : i64, tpu.core_type = #tpu.core_type<tc>, window_params = [{transform_indices = @transform_0, window_bounds = array<i64: 128, 128>}, {transform_indices = @transform_1, window_bounds = array<i64: 128, 128>}, {pipeline_mode = #tpu.pipeline_mode<synchronous>, transform_indices = @transform_2, window_bounds = array<i64: 128, 256>}, {pipeline_mode = #tpu.pipeline_mode<synchronous>, transform_indices = @transform_3, window_bounds = array<i64: 1, 256>}, {transform_indices = @transform_4, window_bounds = array<i64: 128, 256>}]} {
    %c0_i32 = arith.constant 0 : i32
    %0 = arith.cmpi eq, %arg1, %c0_i32 : i32
    %1 = arith.extui %0 : i1 to i32
    %c0_i32_0 = arith.constant 0 : i32
    %2 = arith.cmpi ne, %1, %c0_i32_0 : i32
    scf.if %2 {
      %cst_9 = arith.constant 0.000000e+00 : f32
      %12 = vector.broadcast %cst_9 : f32 to vector<128x128xf32>
      %c0_10 = arith.constant 0 : index
      %c0_11 = arith.constant 0 : index
      %13 = vector.load %arg7[%c0_10, %c0_11] : memref<128x128xf32, #tpu.memory_space<vmem>>, vector<128x128xf32>
      tpu.vector_store %arg7[%c0_10, %c0_11], %12 {strides = array<i32>} : memref<128x128xf32, #tpu.memory_space<vmem>>, vector<128x128xf32>,
    } else {
    }
    %c0 = arith.constant 0 : index
    %c0_1 = arith.constant 0 : index
    %3 = vector.load %arg7[%c0, %c0_1] : memref<128x128xf32, #tpu.memory_space<vmem>>, vector<128x128xf32>
    %c0_2 = arith.constant 0 : index
    %c0_3 = arith.constant 0 : index
    %4 = vector.load %arg2[%c0_2, %c0_3] : memref<128x128xbf16, #tpu.memory_space<vmem>>, vector<128x128xbf16>
    %c0_4 = arith.constant 0 : index
    %c0_5 = arith.constant 0 : index
    %5 = vector.load %arg3[%c0_4, %c0_5] : memref<128x128xbf16, #tpu.memory_space<vmem>>, vector<128x128xbf16>
    %cst = arith.constant dense<0.000000e+00> : vector<128x128xf32>
    %6 = tpu.matmul %4, %5, %cst {dimension_numbers = #tpu.dot_dimension_numbers<[1], [0], [0], [1], [0, 0, 1, 1], [], []>} : vector<128x128xbf16>, vector<128x128xbf16>, vector<128x128xf32> -> vector<128x128xf32>
    %7 = arith.addf %3, %6 : vector<128x128xf32>
    %c0_6 = arith.constant 0 : index
    %c0_7 = arith.constant 0 : index
    %8 = vector.load %arg7[%c0_6, %c0_7] : memref<128x128xf32, #tpu.memory_space<vmem>>, vector<128x128xf32>
    tpu.vector_store %arg7[%c0_6, %c0_7], %7 {strides = array<i32>} : memref<128x128xf32, #tpu.memory_space<vmem>>, vector<128x128xf32>,
    %c1_i32 = arith.constant 1 : i32
    %9 = arith.cmpi eq, %arg1, %c1_i32 : i32
    %10 = arith.extui %9 : i1 to i32
    %c0_i32_8 = arith.constant 0 : i32
    %11 = arith.cmpi ne, %10, %c0_i32_8 : i32
    scf.if %11 {
      %c0_9 = arith.constant 0 : index
      %c0_10 = arith.constant 0 : index
      %12 = vector.load %arg7[%c0_9, %c0_10] : memref<128x128xf32, #tpu.memory_space<vmem>>, vector<128x128xf32>
      %13 = arith.truncf %12 : vector<128x128xf32> to vector<128x128xbf16>
      %c0_11 = arith.constant 0 : index
      %c0_12 = arith.constant 0 : index
      %14 = vector.load %arg4[%c0_11, %c0_12] : memref<128x256xbf16, #tpu.memory_space<vmem>>, vector<128x256xbf16>
      %cst_13 = arith.constant dense<0.000000e+00> : vector<128x256xf32>
      %15 = tpu.matmul %13, %14, %cst_13 {dimension_numbers = #tpu.dot_dimension_numbers<[1], [0], [0], [1], [0, 0, 1, 1], [], []>} : vector<128x128xbf16>, vector<128x256xbf16>, vector<128x256xf32> -> vector<128x256xf32>
      %c0_14 = arith.constant 0 : index
      %c0_15 = arith.constant 0 : index
      %16 = vector.load %arg5[%c0_14, %c0_15] : memref<1x256xf32, #tpu.memory_space<vmem>>, vector<1x256xf32>
      %17 = vector.broadcast %16 : vector<1x256xf32> to vector<128x256xf32>
      %18 = arith.addf %15, %17 : vector<128x256xf32>
      %cst_16 = arith.constant 0.000000e+00 : f32
      %19 = vector.broadcast %cst_16 : f32 to vector<128x256xf32>
      %20 = arith.maximumf %18, %19 : vector<128x256xf32>
      %21 = arith.truncf %20 : vector<128x256xf32> to vector<128x256xbf16>
      %c0_17 = arith.constant 0 : index
      %c0_18 = arith.constant 0 : index
      %22 = vector.load %arg6[%c0_17, %c0_18] : memref<128x256xbf16, #tpu.memory_space<vmem>>, vector<128x256xbf16>
      tpu.vector_store %arg6[%c0_17, %c0_18], %21 {strides = array<i32>} : memref<128x256xbf16, #tpu.memory_space<vmem>>, vector<128x256xbf16>,
    } else {
    }
    return
  }
  func.func @transform_0(%arg0: i32, %arg1: i32) -> (i32, i32) {
    %c0_i32 = arith.constant 0 : i32
    return %arg0, %arg1 : i32, i32
  }
  func.func @transform_1(%arg0: i32, %arg1: i32) -> (i32, i32) {
    %c0_i32 = arith.constant 0 : i32
    %c0_i32_0 = arith.constant 0 : i32
    return %arg1, %c0_i32 : i32, i32
  }
  func.func @transform_2(%arg0: i32, %arg1: i32) -> (i32, i32) {
    %c0_i32 = arith.constant 0 : i32
    %c0_i32_0 = arith.constant 0 : i32
    %c0_i32_1 = arith.constant 0 : i32
    return %c0_i32, %c0_i32_0 : i32, i32
  }
  func.func @transform_3(%arg0: i32, %arg1: i32) -> (i32, i32) {
    %c0_i32 = arith.constant 0 : i32
    %c0_i32_0 = arith.constant 0 : i32
    %c0_i32_1 = arith.constant 0 : i32
    return %c0_i32, %c0_i32_0 : i32, i32
  }
  func.func @transform_4(%arg0: i32, %arg1: i32) -> (i32, i32) {
    %c0_i32 = arith.constant 0 : i32
    %c0_i32_0 = arith.constant 0 : i32
    return %arg0, %c0_i32 : i32, i32
  }
}

</mosaic_0001>

<llo_original>
// kernel: tpu_custom_call.1
$region0: #{tpu_custom_call.1}
  #allocation0 [shape = 'u32[]', space=smem, size = 0x4, offset = 0x4, fixed_abs, tag = 'smem constant byte address 0x4 - core index']
  #allocation1 [shape = 'u32[72,128]{1,0:T(1,128)}', space=vmem, size = 0x9000, scoped, tag = 'internal scratch']
  #allocation2 [shape = 'f32[128,128]{1,0:T(8,128)}', space=vmem, size = 0x10000, scoped, tag = 'scratch operand']
  %s0 = inlined_call_operand.hbm [shape: bf16[256,256], index: 0, kind: input, shape index: {}]
  %s1 = inlined_call_operand.hbm [shape: bf16[256,128], index: 1, kind: input, shape index: {}]
  %s2 = inlined_call_operand.hbm [shape: bf16[128,256], index: 2, kind: input, shape index: {}]
  %s3 = inlined_call_operand.vmem [shape: f32[1,256], index: 3, kind: input, shape index: {}]
  %s4 = inlined_call_operand.hbm [shape: bf16[256,256], index: 4, kind: output, shape index: {}]
  %s5 = sld [smem:[#allocation0]]
  $region69: #{tpu_custom_call.1} parent=0
    _
  %s7 = ssub.s32 1, %s5
  %s8 = scalar_select 0, %s7, %s5
  $region1: #{tpu_custom_call.1} parent=0
    #allocation3 [shape = 'u8[65536]{0}', space=vmem, size = 0x10000, scoped, tag = 'input window, operand 0']
    #allocation4 [shape = 's32[2]{0}', space=sflag, size = 0x8, scoped, tag = 'scoped memory for tpu_custom_call.1']
    #allocation5 [shape = 's32[2]{0}', space=sflag, size = 0x8, scoped, tag = 'scoped memory for tpu_custom_call.1']
    #allocation6 [shape = 'u8[65536]{0}', space=vmem, size = 0x10000, scoped, tag = 'input window, operand 1']
    #allocation7 [shape = 's32[2]{0}', space=sflag, size = 0x8, scoped, tag = 'scoped memory for tpu_custom_call.1']
    #allocation8 [shape = 'u8[65536]{0}', space=vmem, size = 0x10000, scoped, tag = 'input window, operand 2, single buffered']
    #allocation9 [shape = 'u8[131072]{0}', space=vmem, size = 0x20000, scoped, tag = 'output window, operand 0']
    %9 = vsyncpa [#allocation4], 0
    %s10 = scalar_lea.sflag [#allocation4], 1
    %11 = vsyncpa %s10, 0
    %12 = vsyncpa [#allocation7], 0
    %s13 = scalar_lea.sflag [#allocation7], 1
    %14 = vsyncpa %s13, 0
    %15 = vsyncpa [#allocation5], 0
    %s16 = scalar_lea.sflag [#allocation5], 1
    %17 = vsyncpa %s16, 0
    loop: start=0, step=1, limit=6
    $region2: #{tpu_custom_call.1} parent=1 // loop_pre_header
      _
    $region3: #{tpu_custom_call.1} parent=1 // loop_header
      %s19 = sphi 0, %s23
      %p20 = scmp.ge.s32.totalorder %s19, 6
      %s26 = sphi 0, %s38
      %s27 = sphi 0, %s34
      %s28 = sphi 0, %s26
      %s29 = sphi 0, %s27
      %s30 = sphi 0, %s28
      %s31 = sphi 0, %s29
      %s43 = sphi 0, %s45
      %s46 = sphi 0, %s43
      %s47 = sphi 0, %s46
      %s63 = sphi 0, %s47
      %s69 = sphi 0, %s71
      %s72 = sphi 0, %s69
      %s73 = sphi 0, %s72
      %s89 = sphi 0, %s73
      %s93 = sphi 0, %s93
      %s95 = sphi 0, %s93
      %s96 = sphi 0, %s95
      %s110 = sphi 0, %s96
      %s114 = sphi 0, %s114
      %s116 = sphi 0, %s114
      %s117 = sphi 0, %s116
      %s131 = sphi 0, %s117
      %s137 = sphi 0, %s139
      %s140 = sphi 0, %s137
      %s141 = sphi 0, %s140
      %s157 = sphi 0, %s141
    $region4: #{tpu_custom_call.1} parent=1 // loop_header_branch
      %22 = sbr.rel (%p20) target = $region8
    $region5: #{tpu_custom_call.1} parent=1 // loop_body
      %s24 = ssub.s32 %s19, 1
      %s25 = ssub.s32 %s19, 2
      %s32 = sadd.s32 1, %s27
      %p33 = scmp.ge.s32.totalorder %s32, 2
      %s34 = scalar_select %p33, 0, %s32
      %s35 = sadd.s32 1, %s26
      %s36 = scalar_select %p33, %s35, %s26
      %p37 = scmp.ge.s32.totalorder %s36, 2
      %s38 = scalar_select %p37, 0, %s36
      %s39 = ssub.s32 %s26, %s38
      %s40 = ssub.s32 %s27, %s34
      %s41 = sor.u32 %s39, %s40
      %p42 = scmp.eq.s32.totalorder %s41, 0
      %s44 = sadd.s32 %s43, 1
      %s45 = scalar_select %p42, %s43, %s44
      %p48 = pneg %p42
      %p49 = scmp.eq.s32.totalorder %s19, 3
      %p50 = por %p48, %p49
      %p51 = scmp.ne.s32.totalorder %s43, %s46
      %p52 = scmp.eq.s32.totalorder %s19, 0
      %p53 = por %p51, %p52
      %p54 = scmp.ne.s32.totalorder %s43, %s46
      %p55 = scmp.eq.s32.totalorder %s24, 3
      %p56 = por %p54, %p55
      %p57 = scmp.ne.s32.totalorder %s46, %s47
      %p58 = scmp.eq.s32.totalorder %s24, 0
      %p59 = por %p57, %p58
      %p60 = scmp.ne.s32.totalorder %s46, %s47
      %p61 = scmp.eq.s32.totalorder %s25, 3
      %p62 = por %p60, %p61
      %p64 = scmp.ne.s32.totalorder %s47, %s63
      %p65 = scmp.eq.s32.totalorder %s25, 0
      %p66 = por %p64, %p65
      %s67 = ssub.s32 %s27, %s34
      %p68 = scmp.eq.s32.totalorder %s67, 0
      %s70 = sadd.s32 %s69, 1
      %s71 = scalar_select %p68, %s69, %s70
      %p74 = pneg %p68
      %p75 = scmp.eq.s32.totalorder %s19, 3
      %p76 = por %p74, %p75
      %p77 = scmp.ne.s32.totalorder %s69, %s72
      %p78 = scmp.eq.s32.totalorder %s19, 0
      %p79 = por %p77, %p78
      %p80 = scmp.ne.s32.totalorder %s69, %s72
      %p81 = scmp.eq.s32.totalorder %s24, 3
      %p82 = por %p80, %p81
      %p83 = scmp.ne.s32.totalorder %s72, %s73
      %p84 = scmp.eq.s32.totalorder %s24, 0
      %p85 = por %p83, %p84
      %p86 = scmp.ne.s32.totalorder %s72, %s73
      %p87 = scmp.eq.s32.totalorder %s25, 3
      %p88 = por %p86, %p87
      %p90 = scmp.ne.s32.totalorder %s73, %s89
      %p91 = scmp.eq.s32.totalorder %s25, 0
      %p92 = por %p90, %p91
      %s94 = sadd.s32 %s93, 1
      %p97 = scmp.eq.s32.totalorder %s19, 3
      %p98 = scmp.ne.s32.totalorder %s93, %s95
      %p99 = scmp.eq.s32.totalorder %s19, 0
      %p100 = por %p98, %p99
      %p101 = scmp.ne.s32.totalorder %s93, %s95
      %p102 = scmp.eq.s32.totalorder %s24, 3
      %p103 = por %p101, %p102
      %p104 = scmp.ne.s32.totalorder %s95, %s96
      %p105 = scmp.eq.s32.totalorder %s24, 0
      %p106 = por %p104, %p105
      %p107 = scmp.ne.s32.totalorder %s95, %s96
      %p108 = scmp.eq.s32.totalorder %s25, 3
      %p109 = por %p107, %p108
      %p111 = scmp.ne.s32.totalorder %s96, %s110
      %p112 = scmp.eq.s32.totalorder %s25, 0
      %p113 = por %p111, %p112
      %s115 = sadd.s32 %s114, 1
      %p118 = scmp.eq.s32.totalorder %s19, 3
      %p119 = scmp.ne.s32.totalorder %s114, %s116
      %p120 = scmp.eq.s32.totalorder %s19, 0
      %p121 = por %p119, %p120
      %p122 = scmp.ne.s32.totalorder %s114, %s116
      %p123 = scmp.eq.s32.totalorder %s24, 3
      %p124 = por %p122, %p123
      %p125 = scmp.ne.s32.totalorder %s116, %s117
      %p126 = scmp.eq.s32.totalorder %s24, 0
      %p127 = por %p125, %p126
      %p128 = scmp.ne.s32.totalorder %s116, %s117
      %p129 = scmp.eq.s32.totalorder %s25, 3
      %p130 = por %p128, %p129
      %p132 = scmp.ne.s32.totalorder %s117, %s131
      %p133 = scmp.eq.s32.totalorder %s25, 0
      %p134 = por %p132, %p133
      %s135 = ssub.s32 %s26, %s38
      %p136 = scmp.eq.s32.totalorder %s135, 0
      %s138 = sadd.s32 %s137, 1
      %s139 = scalar_select %p136, %s137, %s138
      %p142 = pneg %p136
      %p143 = scmp.eq.s32.totalorder %s19, 3
      %p144 = por %p142, %p143
      %p145 = scmp.ne.s32.totalorder %s137, %s140
      %p146 = scmp.eq.s32.totalorder %s19, 0
      %p147 = por %p145, %p146
      %p148 = scmp.ne.s32.totalorder %s137, %s140
      %p149 = scmp.eq.s32.totalorder %s24, 3
      %p150 = por %p148, %p149
      %p151 = scmp.ne.s32.totalorder %s140, %s141
      %p152 = scmp.eq.s32.totalorder %s24, 0
      %p153 = por %p151, %p152
      %p154 = scmp.ne.s32.totalorder %s140, %s141
      %p155 = scmp.eq.s32.totalorder %s25, 3
      %p156 = por %p154, %p155
      %p158 = scmp.ne.s32.totalorder %s141, %s157
      %p159 = scmp.eq.s32.totalorder %s25, 0
      %p160 = por %p158, %p159
      %p161 = scmp.le.s32.totalorder 1, %s19
      %p162 = scmp.lt.s32.totalorder %s19, 5
      %p163 = pnand %p161, %p162
      %p164 = pneg %p163
      // Predicated region
      $region9: #{tpu_custom_call.1} parent=5 // pred_check
        _
      $region10: #{tpu_custom_call.1} parent=5 // pred_check_branch
        %166 = sbr.rel (%p163) target = $region12
      $region11: #{tpu_custom_call.1} parent=5 // pred_region
        %s167 = ssub.s32 %s19, 1
        // Predicated region
        $region13: #{tpu_custom_call.1} parent=11 // pred_check
          %p168 = pneg %p106
        $region14: #{tpu_custom_call.1} parent=11 // pred_check_branch
          %170 = sbr.rel (%p168) target = $region16
        $region15: #{tpu_custom_call.1} parent=11 // pred_region
          %172 = vsyncadd [#allocation7], 0
          %s173 = sshll.u32 %s2, 4
          %s174 = int_to_ptr.hbm [resolvable:$true] %s173
          %s175 = sshll.u32 [#allocation8], 4
          %s176 = int_to_ptr.vmem [resolvable:$true] %s175
          %181 = dma.hbm_to_vmem [thread:$0]  %s174, 2048, %s176, [#allocation7], 128, 128, 8
        $region16: #{tpu_custom_call.1} parent=11 // pred_fallthru
          _
        // Predicated region
        $region17: #{tpu_custom_call.1} parent=11 // pred_check
          %p182 = pneg %p127
        $region18: #{tpu_custom_call.1} parent=11 // pred_check_branch
          %184 = sbr.rel (%p182) target = $region20
        $region19: #{tpu_custom_call.1} parent=11 // pred_region
          _
        $region20: #{tpu_custom_call.1} parent=11 // pred_fallthru
          _
      $region12: #{tpu_custom_call.1} parent=5 // pred_fallthru
        _
      %p185 = scmp.lt.s32.totalorder %s19, 4
      // Predicated region
      $region21: #{tpu_custom_call.1} parent=5 // pred_check
        %p186 = pneg %p185
      $region22: #{tpu_custom_call.1} parent=5 // pred_check_branch
        %188 = sbr.rel (%p186) target = $region24
      $region23: #{tpu_custom_call.1} parent=5 // pred_region
        // Predicated region
        $region25: #{tpu_custom_call.1} parent=23 // pred_check
          %p189 = pneg %p53
        $region26: #{tpu_custom_call.1} parent=23 // pred_check_branch
          %191 = sbr.rel (%p189) target = $region28
        $region27: #{tpu_custom_call.1} parent=23 // pred_region
          %s192 = sand.u32 %s43, 1
          %s193 = scalar_lea.sflag [#allocation4], %s192
          %s194 = sand.u32 %s43, 1
          %s195 = smul.addr %s194, 64
          %s196 = scalar_lea.vmem [#allocation3], %s195
          %s197 = smul.u32 16, %s26
          %199 = vsyncadd %s193, 0
          %s200 = smul.addr %s197, 2
          %s201 = sadd.s32 %s27, %s200
          %s202 = smul.addr %s201, 4
          %s203 = scalar_lea.hbm %s0, %s202
          %s204 = sshll.u32 %s203, 4
          %s205 = int_to_ptr.hbm [resolvable:$true] %s204
          %s206 = sshll.u32 %s196, 4
          %s207 = int_to_ptr.vmem [resolvable:$true] %s206
          %212 = dma.hbm_to_vmem [thread:$0]  %s205, 1024, %s207, %s193, 128, 64, 4
        $region28: #{tpu_custom_call.1} parent=23 // pred_fallthru
          _
        // Predicated region
        $region29: #{tpu_custom_call.1} parent=23 // pred_check
          %p213 = pneg %p79
        $region30: #{tpu_custom_call.1} parent=23 // pred_check_branch
          %215 = sbr.rel (%p213) target = $region32
        $region31: #{tpu_custom_call.1} parent=23 // pred_region
          %s216 = sand.u32 %s19, 1
          %s217 = scalar_lea.sflag [#allocation7], %s216
          %s218 = sand.u32 %s69, 1
          %s219 = smul.addr %s218, 64
          %s220 = scalar_lea.vmem [#allocation6], %s219
          %s221 = smul.u32 16, %s27
          %223 = vsyncadd %s217, 0
          %s224 = smul.addr %s221, 4
          %s225 = scalar_lea.hbm %s1, %s224
          %s226 = sshll.u32 %s225, 4
          %s227 = int_to_ptr.hbm [resolvable:$true] %s226
          %s228 = sshll.u32 %s220, 4
          %s229 = int_to_ptr.vmem [resolvable:$true] %s228
          %234 = dma.hbm_to_vmem [thread:$0]  %s227, 1024, %s229, %s217, 64, 64, 4
        $region32: #{tpu_custom_call.1} parent=23 // pred_fallthru
          _
      $region24: #{tpu_custom_call.1} parent=5 // pred_fallthru
        _
      %p235 = scmp.le.s32.totalorder 1, %s19
      %p236 = scmp.lt.s32.totalorder %s19, 5
      %p237 = pnand %p235, %p236
      %p238 = pneg %p237
      // Predicated region
      $region33: #{tpu_custom_call.1} parent=5 // pred_check
        _
      $region34: #{tpu_custom_call.1} parent=5 // pred_check_branch
        %240 = sbr.rel (%p237) target = $region36
      $region35: #{tpu_custom_call.1} parent=5 // pred_region
        %s241 = ssub.s32 %s19, 1
        %s242 = sand.u32 %s46, 1
        %s243 = scalar_lea.sflag [#allocation4], %s242
        %s244 = sand.u32 %s46, 1
        %s245 = smul.addr %s244, 64
        %s246 = scalar_lea.vmem [#allocation3], %s245
        // Predicated region
        $region37: #{tpu_custom_call.1} parent=35 // pred_check
          %p247 = pneg %p59
        $region38: #{tpu_custom_call.1} parent=35 // pred_check_branch
          %249 = sbr.rel (%p247) target = $region40
        $region39: #{tpu_custom_call.1} parent=35 // pred_region
          %251 = dma.done %s243, 1024
        $region40: #{tpu_custom_call.1} parent=35 // pred_fallthru
          _
        %s252 = sand.u32 %s24, 1
        %s253 = scalar_lea.sflag [#allocation7], %s252
        %s254 = sand.u32 %s72, 1
        %s255 = smul.addr %s254, 64
        %s256 = scalar_lea.vmem [#allocation6], %s255
        // Predicated region
        $region41: #{tpu_custom_call.1} parent=35 // pred_check
          %p257 = pneg %p85
        $region42: #{tpu_custom_call.1} parent=35 // pred_check_branch
          %259 = sbr.rel (%p257) target = $region44
        $region43: #{tpu_custom_call.1} parent=35 // pred_region
          %261 = dma.done %s253, 1024
        $region44: #{tpu_custom_call.1} parent=35 // pred_fallthru
          _
        // Predicated region
        $region45: #{tpu_custom_call.1} parent=35 // pred_check
          %p262 = pneg %p106
        $region46: #{tpu_custom_call.1} parent=35 // pred_check_branch
          %264 = sbr.rel (%p262) target = $region48
        $region47: #{tpu_custom_call.1} parent=35 // pred_region
          %266 = dma.done [#allocation7], 2048
        $region48: #{tpu_custom_call.1} parent=35 // pred_fallthru
          _
        %s267 = sand.u32 %s46, 1
        %s268 = scalar_lea.sflag [#allocation4], %s267
        %s269 = sand.u32 %s46, 1
        %s270 = smul.addr %s269, 64
        %s271 = scalar_lea.vmem [#allocation3], %s270
        %p272 = pneg %p59
        %p273 = pneg %p56
        %s274 = sand.u32 %s24, 1
        %s275 = scalar_lea.sflag [#allocation7], %s274
        %s276 = sand.u32 %s72, 1
        %s277 = smul.addr %s276, 64
        %s278 = scalar_lea.vmem [#allocation6], %s277
        %p279 = pneg %p85
        %p280 = pneg %p82
        %p281 = pneg %p106
        %p282 = pneg %p103
        %p283 = pneg %p127
        %p284 = pneg %p124
        %p285 = pneg %p153
        %p286 = pneg %p150
        %s287 = sand.u32 %s140, 1
        %s288 = scalar_lea.sflag [#allocation5], %s287
        %s289 = sand.u32 %s140, 1
        %s290 = smul.addr %s289, 128
        %s291 = scalar_lea.vmem [#allocation9], %s290
        %s292 = smul.u32 16, %s28
        %s293 = smul.u32 16, %s29
        %s294 = smul.u32 16, %s28
        %p295 = scmp.eq.s32.totalorder %s29, 0
        // Predicated region
        $region49: #{tpu_custom_call.1} parent=35 // pred_check
          %p296 = pneg %p295
        $region50: #{tpu_custom_call.1} parent=35 // pred_check_branch
          %298 = sbr.rel (%p296) target = $region52
        $region51: #{tpu_custom_call.1} parent=35 // pred_region
          %299 = vst [vmem:[#allocation2] sm:$0xff] 0.0
          %300 = vst [vmem:[#allocation2 + $0x8] sm:$0xff] 0.0
          %301 = vst [vmem:[#allocation2 + $0x10] sm:$0xff] 0.0
          %302 = vst [vmem:[#allocation2 + $0x18] sm:$0xff] 0.0
          %303 = vst [vmem:[#allocation2 + $0x20] sm:$0xff] 0.0
          %304 = vst [vmem:[#allocation2 + $0x28] sm:$0xff] 0.0
          %305 = vst [vmem:[#allocation2 + $0x30] sm:$0xff] 0.0
          %306 = vst [vmem:[#allocation2 + $0x38] sm:$0xff] 0.0
          %307 = vst [vmem:[#allocation2 + $0x40] sm:$0xff] 0.0
          %308 = vst [vmem:[#allocation2 + $0x48] sm:$0xff] 0.0
          %309 = vst [vmem:[#allocation2 + $0x50] sm:$0xff] 0.0
          %310 = vst [vmem:[#allocation2 + $0x58] sm:$0xff] 0.0
          %311 = vst [vmem:[#allocation2 + $0x60] sm:$0xff] 0.0
          %312 = vst [vmem:[#allocation2 + $0x68] sm:$0xff] 0.0
          %313 = vst [vmem:[#allocation2 + $0x70] sm:$0xff] 0.0
          %314 = vst [vmem:[#allocation2 + $0x78] sm:$0xff] 0.0
        $region52: #{tpu_custom_call.1} parent=35 // pred_fallthru
          _
        %v315 = vld [vmem:[#allocation2] sm:$0xff]
        %v316 = vld [vmem:[#allocation2 + $0x8] sm:$0xff]
        %v317 = vld [vmem:[#allocation2 + $0x10] sm:$0xff]
        %v318 = vld [vmem:[#allocation2 + $0x18] sm:$0xff]
        %v319 = vld [vmem:[#allocation2 + $0x20] sm:$0xff]
        %v320 = vld [vmem:[#allocation2 + $0x28] sm:$0xff]
        %v321 = vld [vmem:[#allocation2 + $0x30] sm:$0xff]
        %v322 = vld [vmem:[#allocation2 + $0x38] sm:$0xff]
        %v323 = vld [vmem:[#allocation2 + $0x40] sm:$0xff]
        %v324 = vld [vmem:[#allocation2 + $0x48] sm:$0xff]
        %v325 = vld [vmem:[#allocation2 + $0x50] sm:$0xff]
        %v326 = vld [vmem:[#allocation2 + $0x58] sm:$0xff]
        %v327 = vld [vmem:[#allocation2 + $0x60] sm:$0xff]
        %v328 = vld [vmem:[#allocation2 + $0x68] sm:$0xff]
        %v329 = vld [vmem:[#allocation2 + $0x70] sm:$0xff]
        %v330 = vld [vmem:[#allocation2 + $0x78] sm:$0xff]
        %v331 = vld [vmem:[%s246] sm:$0xf]
        %v332 = vld [vmem:[%s246 + $0x4] sm:$0xf]
        %v333 = vld [vmem:[%s246 + $0x8] sm:$0xf]
        %v334 = vld [vmem:[%s246 + $0xc] sm:$0xf]
        %v335 = vld [vmem:[%s246 + $0x10] sm:$0xf]
        %v336 = vld [vmem:[%s246 + $0x14] sm:$0xf]
        %v337 = vld [vmem:[%s246 + $0x18] sm:$0xf]
        %v338 = vld [vmem:[%s246 + $0x1c] sm:$0xf]
        %v339 = vld [vmem:[%s246 + $0x20] sm:$0xf]
        %v340 = vld [vmem:[%s246 + $0x24] sm:$0xf]
        %v341 = vld [vmem:[%s246 + $0x28] sm:$0xf]
        %v342 = vld [vmem:[%s246 + $0x2c] sm:$0xf]
        %v343 = vld [vmem:[%s246 + $0x30] sm:$0xf]
        %v344 = vld [vmem:[%s246 + $0x34] sm:$0xf]
        %v345 = vld [vmem:[%s246 + $0x38] sm:$0xf]
        %v346 = vld [vmem:[%s246 + $0x3c] sm:$0xf]
        %v347 = vld [vmem:[%s256] sm:$0xf]
        %v348 = vld [vmem:[%s256 + $0x4] sm:$0xf]
        %v349 = vld [vmem:[%s256 + $0x8] sm:$0xf]
        %v350 = vld [vmem:[%s256 + $0xc] sm:$0xf]
        %v351 = vld [vmem:[%s256 + $0x10] sm:$0xf]
        %v352 = vld [vmem:[%s256 + $0x14] sm:$0xf]
        %v353 = vld [vmem:[%s256 + $0x18] sm:$0xf]
        %v354 = vld [vmem:[%s256 + $0x1c] sm:$0xf]
        %v355 = vld [vmem:[%s256 + $0x20] sm:$0xf]
        %v356 = vld [vmem:[%s256 + $0x24] sm:$0xf]
        %v357 = vld [vmem:[%s256 + $0x28] sm:$0xf]
        %v358 = vld [vmem:[%s256 + $0x2c] sm:$0xf]
        %v359 = vld [vmem:[%s256 + $0x30] sm:$0xf]
        %v360 = vld [vmem:[%s256 + $0x34] sm:$0xf]
        %v361 = vld [vmem:[%s256 + $0x38] sm:$0xf]
        %v362 = vld [vmem:[%s256 + $0x3c] sm:$0xf]
        %v379 = vunpack.c.l.b16 %v331
        %v380 = vunpack.c.l.b16 %v332
        %v381 = vunpack.c.l.b16 %v333
        %v382 = vunpack.c.l.b16 %v334
        %v383 = vunpack.c.l.b16 %v335
        %v384 = vunpack.c.l.b16 %v336
        %v385 = vunpack.c.l.b16 %v337
        %v386 = vunpack.c.l.b16 %v338
        %v387 = vunpack.c.l.b16 %v339
        %v388 = vunpack.c.l.b16 %v340
        %v389 = vunpack.c.l.b16 %v341
        %v390 = vunpack.c.l.b16 %v342
        %v391 = vunpack.c.l.b16 %v343
        %v392 = vunpack.c.l.b16 %v344
        %v393 = vunpack.c.l.b16 %v345
        %v394 = vunpack.c.l.b16 %v346
        %v395 = vpack.c.b16 %v380, %v379
        %v396 = vpack.c.b16 %v382, %v381
        %v397 = vpack.c.b16 %v384, %v383
        %v398 = vpack.c.b16 %v386, %v385
        %v399 = vpack.c.b16 %v388, %v387
        %v400 = vpack.c.b16 %v390, %v389
        %v401 = vpack.c.b16 %v392, %v391
        %v402 = vpack.c.b16 %v394, %v393
        %v427 = vunpack.c.l.b16 %v347
        %v428 = vunpack.c.l.b16 %v348
        %v429 = vunpack.c.l.b16 %v349
        %v430 = vunpack.c.l.b16 %v350
        %v431 = vunpack.c.l.b16 %v351
        %v432 = vunpack.c.l.b16 %v352
        %v433 = vunpack.c.l.b16 %v353
        %v434 = vunpack.c.l.b16 %v354
        %v435 = vunpack.c.l.b16 %v355
        %v436 = vunpack.c.l.b16 %v356
        %v437 = vunpack.c.l.b16 %v357
        %v438 = vunpack.c.l.b16 %v358
        %v439 = vunpack.c.l.b16 %v359
        %v440 = vunpack.c.l.b16 %v360
        %v441 = vunpack.c.l.b16 %v361
        %v442 = vunpack.c.l.b16 %v362
        %v443 = vpack.c.b16 %v428, %v427
        %v444 = vpack.c.b16 %v430, %v429
        %v445 = vpack.c.b16 %v432, %v431
        %v446 = vpack.c.b16 %v434, %v433
        %v447 = vpack.c.b16 %v436, %v435
        %v448 = vpack.c.b16 %v438, %v437
        %v449 = vpack.c.b16 %v440, %v439
        %v450 = vpack.c.b16 %v442, %v441
        %459 = vmatpush.bf16.msra.mxu0 %v450
        %460 = vmatpush.bf16.msra.mxu0 %v449
        %461 = vmatpush.bf16.msra.mxu0 %v448
        %462 = vmatpush.bf16.msra.mxu0 %v447
        %463 = vmatpush.bf16.msra.mxu0 %v446
        %464 = vmatpush.bf16.msra.mxu0 %v445
        %465 = vmatpush.bf16.msra.mxu0 %v444
        %466 = vmatpush.bf16.msra.mxu0 %v443
        %467 = vmatmul.bf16.gmra.mxu0 %v395
        %v468 = vpop.f32.mrf.mxu0
        %v469 = vadd.f32 0.0, %v468
        %v470 = vpop.f32.mrf.mxu0
        %v471 = vadd.f32 0.0, %v470
        %472 = vmatmul.bf16.gmra.mxu0 %v396
        %v473 = vpop.f32.mrf.mxu0
        %v474 = vadd.f32 0.0, %v473
        %v475 = vpop.f32.mrf.mxu0
        %v476 = vadd.f32 0.0, %v475
        %477 = vmatmul.bf16.gmra.mxu0 %v397
        %v478 = vpop.f32.mrf.mxu0
        %v479 = vadd.f32 0.0, %v478
        %v480 = vpop.f32.mrf.mxu0
        %v481 = vadd.f32 0.0, %v480
        %482 = vmatmul.bf16.gmra.mxu0 %v398
        %v483 = vpop.f32.mrf.mxu0
        %v484 = vadd.f32 0.0, %v483
        %v485 = vpop.f32.mrf.mxu0
        %v486 = vadd.f32 0.0, %v485
        %487 = vmatmul.bf16.gmra.mxu0 %v399
        %v488 = vpop.f32.mrf.mxu0
        %v489 = vadd.f32 0.0, %v488
        %v490 = vpop.f32.mrf.mxu0
        %v491 = vadd.f32 0.0, %v490
        %492 = vmatmul.bf16.gmra.mxu0 %v400
        %v493 = vpop.f32.mrf.mxu0
        %v494 = vadd.f32 0.0, %v493
        %v495 = vpop.f32.mrf.mxu0
        %v496 = vadd.f32 0.0, %v495
        %497 = vmatmul.bf16.gmra.mxu0 %v401
        %v498 = vpop.f32.mrf.mxu0
        %v499 = vadd.f32 0.0, %v498
        %v500 = vpop.f32.mrf.mxu0
        %v501 = vadd.f32 0.0, %v500
        %502 = vmatmul.bf16.gmra.mxu0 %v402
        %v503 = vpop.f32.mrf.mxu0
        %v504 = vadd.f32 0.0, %v503
        %v505 = vpop.f32.mrf.mxu0
        %v506 = vadd.f32 0.0, %v505
        %507 = vdwg.mxu0
        %v508 = vadd.f32 %v315, %v469
        %v509 = vadd.f32 %v316, %v471
        %v510 = vadd.f32 %v317, %v474
        %v511 = vadd.f32 %v318, %v476
        %v512 = vadd.f32 %v319, %v479
        %v513 = vadd.f32 %v320, %v481
        %v514 = vadd.f32 %v321, %v484
        %v515 = vadd.f32 %v322, %v486
        %v516 = vadd.f32 %v323, %v489
        %v517 = vadd.f32 %v324, %v491
        %v518 = vadd.f32 %v325, %v494
        %v519 = vadd.f32 %v326, %v496
        %v520 = vadd.f32 %v327, %v499
        %v521 = vadd.f32 %v328, %v501
        %v522 = vadd.f32 %v329, %v504
        %v523 = vadd.f32 %v330, %v506
        %524 = vst [vmem:[#allocation2] sm:$0xff] %v508
        %525 = vst [vmem:[#allocation2 + $0x8] sm:$0xff] %v509
        %526 = vst [vmem:[#allocation2 + $0x10] sm:$0xff] %v510
        %527 = vst [vmem:[#allocation2 + $0x18] sm:$0xff] %v511
        %528 = vst [vmem:[#allocation2 + $0x20] sm:$0xff] %v512
        %529 = vst [vmem:[#allocation2 + $0x28] sm:$0xff] %v513
        %530 = vst [vmem:[#allocation2 + $0x30] sm:$0xff] %v514
        %531 = vst [vmem:[#allocation2 + $0x38] sm:$0xff] %v515
        %532 = vst [vmem:[#allocation2 + $0x40] sm:$0xff] %v516
        %533 = vst [vmem:[#allocation2 + $0x48] sm:$0xff] %v517
        %534 = vst [vmem:[#allocation2 + $0x50] sm:$0xff] %v518
        %535 = vst [vmem:[#allocation2 + $0x58] sm:$0xff] %v519
        %536 = vst [vmem:[#allocation2 + $0x60] sm:$0xff] %v520
        %537 = vst [vmem:[#allocation2 + $0x68] sm:$0xff] %v521
        %538 = vst [vmem:[#allocation2 + $0x70] sm:$0xff] %v522
        %539 = vst [vmem:[#allocation2 + $0x78] sm:$0xff] %v523
        %p540 = scmp.eq.s32.totalorder %s29, 1
        // Predicated region
        $region53: #{tpu_custom_call.1} parent=35 // pred_check
          %p541 = pneg %p540
        $region54: #{tpu_custom_call.1} parent=35 // pred_check_branch
          %543 = sbr.rel (%p541) target = $region56
        $region55: #{tpu_custom_call.1} parent=35 // pred_region
          %v544 = vld [vmem:[#allocation2] sm:$0xff]
          %v545 = vld [vmem:[#allocation2 + $0x8] sm:$0xff]
          %v546 = vld [vmem:[#allocation2 + $0x10] sm:$0xff]
          %v547 = vld [vmem:[#allocation2 + $0x18] sm:$0xff]
          %v548 = vld [vmem:[#allocation2 + $0x20] sm:$0xff]
          %v549 = vld [vmem:[#allocation2 + $0x28] sm:$0xff]
          %v550 = vld [vmem:[#allocation2 + $0x30] sm:$0xff]
          %v551 = vld [vmem:[#allocation2 + $0x38] sm:$0xff]
          %v552 = vld [vmem:[#allocation2 + $0x40] sm:$0xff]
          %v553 = vld [vmem:[#allocation2 + $0x48] sm:$0xff]
          %v554 = vld [vmem:[#allocation2 + $0x50] sm:$0xff]
          %v555 = vld [vmem:[#allocation2 + $0x58] sm:$0xff]
          %v556 = vld [vmem:[#allocation2 + $0x60] sm:$0xff]
          %v557 = vld [vmem:[#allocation2 + $0x68] sm:$0xff]
          %v558 = vld [vmem:[#allocation2 + $0x70] sm:$0xff]
          %v559 = vld [vmem:[#allocation2 + $0x78] sm:$0xff]
          %v560 = vpack.c.bf16 %v545, %v544
          %v561 = vpack.c.bf16 %v547, %v546
          %v562 = vpack.c.bf16 %v549, %v548
          %v563 = vpack.c.bf16 %v551, %v550
          %v564 = vpack.c.bf16 %v553, %v552
          %v565 = vpack.c.bf16 %v555, %v554
          %v566 = vpack.c.bf16 %v557, %v556
          %v567 = vpack.c.bf16 %v559, %v558
          %v568 = vld [vmem:[#allocation8] sm:$0xff]
          %v569 = vld [vmem:[#allocation8 + $0x8] sm:$0xff]
          %v570 = vld [vmem:[#allocation8 + $0x10] sm:$0xff]
          %v571 = vld [vmem:[#allocation8 + $0x18] sm:$0xff]
          %v572 = vld [vmem:[#allocation8 + $0x20] sm:$0xff]
          %v573 = vld [vmem:[#allocation8 + $0x28] sm:$0xff]
          %v574 = vld [vmem:[#allocation8 + $0x30] sm:$0xff]
          %v575 = vld [vmem:[#allocation8 + $0x38] sm:$0xff]
          %v576 = vld [vmem:[#allocation8 + $0x40] sm:$0xff]
          %v577 = vld [vmem:[#allocation8 + $0x48] sm:$0xff]
          %v578 = vld [vmem:[#allocation8 + $0x50] sm:$0xff]
          %v579 = vld [vmem:[#allocation8 + $0x58] sm:$0xff]
          %v580 = vld [vmem:[#allocation8 + $0x60] sm:$0xff]
          %v581 = vld [vmem:[#allocation8 + $0x68] sm:$0xff]
          %v582 = vld [vmem:[#allocation8 + $0x70] sm:$0xff]
          %v583 = vld [vmem:[#allocation8 + $0x78] sm:$0xff]
          %v584 = vld [vmem:[%s3] sm:$0x3]
          %v586 = vperm.slane %v584, 0
          %v587 = vperm.slane %v584, 1
          %v606 = vunpack.c.l.b16 %v568
          %v607 = vunpack.c.h.b16 %v568
          %v608 = vunpack.c.l.b16 %v569
          %v609 = vunpack.c.h.b16 %v569
          %v610 = vunpack.c.l.b16 %v570
          %v611 = vunpack.c.h.b16 %v570
          %v612 = vunpack.c.l.b16 %v571
          %v613 = vunpack.c.h.b16 %v571
          %v614 = vunpack.c.l.b16 %v572
          %v615 = vunpack.c.h.b16 %v572
          %v616 = vunpack.c.l.b16 %v573
          %v617 = vunpack.c.h.b16 %v573
          %v618 = vunpack.c.l.b16 %v574
          %v619 = vunpack.c.h.b16 %v574
          %v620 = vunpack.c.l.b16 %v575
          %v621 = vunpack.c.h.b16 %v575
          %v622 = vunpack.c.l.b16 %v576
          %v623 = vunpack.c.h.b16 %v576
          %v624 = vunpack.c.l.b16 %v577
          %v625 = vunpack.c.h.b16 %v577
          %v626 = vunpack.c.l.b16 %v578
          %v627 = vunpack.c.h.b16 %v578
          %v628 = vunpack.c.l.b16 %v579
          %v629 = vunpack.c.h.b16 %v579
          %v630 = vunpack.c.l.b16 %v580
          %v631 = vunpack.c.h.b16 %v580
          %v632 = vunpack.c.l.b16 %v581
          %v633 = vunpack.c.h.b16 %v581
          %v634 = vunpack.c.l.b16 %v582
          %v635 = vunpack.c.h.b16 %v582
          %v636 = vunpack.c.l.b16 %v583
          %v637 = vunpack.c.h.b16 %v583
          %v638 = vpack.c.b16 %v608, %v606
          %v639 = vpack.c.b16 %v609, %v607
          %v640 = vpack.c.b16 %v612, %v610
          %v641 = vpack.c.b16 %v613, %v611
          %v642 = vpack.c.b16 %v616, %v614
          %v643 = vpack.c.b16 %v617, %v615
          %v644 = vpack.c.b16 %v620, %v618
          %v645 = vpack.c.b16 %v621, %v619
          %v646 = vpack.c.b16 %v624, %v622
          %v647 = vpack.c.b16 %v625, %v623
          %v648 = vpack.c.b16 %v628, %v626
          %v649 = vpack.c.b16 %v629, %v627
          %v650 = vpack.c.b16 %v632, %v630
          %v651 = vpack.c.b16 %v633, %v631
          %v652 = vpack.c.b16 %v636, %v634
          %v653 = vpack.c.b16 %v637, %v635
          %670 = vmatpush.bf16.msra.mxu0 %v652
          %671 = vmatpush.bf16.msra.mxu0 %v650
          %672 = vmatpush.bf16.msra.mxu0 %v648
          %673 = vmatpush.bf16.msra.mxu0 %v646
          %674 = vmatpush.bf16.msra.mxu0 %v644
          %675 = vmatpush.bf16.msra.mxu0 %v642
          %676 = vmatpush.bf16.msra.mxu0 %v640
          %677 = vmatpush.bf16.msra.mxu0 %v638
          %678 = vmatmul.bf16.gmra.mxu0 %v560
          %v679 = vpop.f32.mrf.mxu0
          %v680 = vadd.f32 %v586, %v679
          %v681 = vpop.f32.mrf.mxu0
          %v682 = vadd.f32 %v586, %v681
          %683 = vmatmul.bf16.gmra.mxu0 %v561
          %v684 = vpop.f32.mrf.mxu0
          %v685 = vadd.f32 %v586, %v684
          %v686 = vpop.f32.mrf.mxu0
          %v687 = vadd.f32 %v586, %v686
          %688 = vmatmul.bf16.gmra.mxu0 %v562
          %v689 = vpop.f32.mrf.mxu0
          %v690 = vadd.f32 %v586, %v689
          %v691 = vpop.f32.mrf.mxu0
          %v692 = vadd.f32 %v586, %v691
          %693 = vmatmul.bf16.gmra.mxu0 %v563
          %v694 = vpop.f32.mrf.mxu0
          %v695 = vadd.f32 %v586, %v694
          %v696 = vpop.f32.mrf.mxu0
          %v697 = vadd.f32 %v586, %v696
          %698 = vmatmul.bf16.gmra.mxu0 %v564
          %v699 = vpop.f32.mrf.mxu0
          %v700 = vadd.f32 %v586, %v699
          %v701 = vpop.f32.mrf.mxu0
          %v702 = vadd.f32 %v586, %v701
          %703 = vmatmul.bf16.gmra.mxu0 %v565
          %v704 = vpop.f32.mrf.mxu0
          %v705 = vadd.f32 %v586, %v704
          %v706 = vpop.f32.mrf.mxu0
          %v707 = vadd.f32 %v586, %v706
          %708 = vmatmul.bf16.gmra.mxu0 %v566
          %v709 = vpop.f32.mrf.mxu0
          %v710 = vadd.f32 %v586, %v709
          %v711 = vpop.f32.mrf.mxu0
          %v712 = vadd.f32 %v586, %v711
          %713 = vmatmul.bf16.gmra.mxu0 %v567
          %v714 = vpop.f32.mrf.mxu0
          %v715 = vadd.f32 %v586, %v714
          %v716 = vpop.f32.mrf.mxu0
          %v717 = vadd.f32 %v586, %v716
          %718 = vdwg.mxu0
          %719 = vmatpush.bf16.msra.mxu0 %v653
          %720 = vmatpush.bf16.msra.mxu0 %v651
          %721 = vmatpush.bf16.msra.mxu0 %v649
          %722 = vmatpush.bf16.msra.mxu0 %v647
          %723 = vmatpush.bf16.msra.mxu0 %v645
          %724 = vmatpush.bf16.msra.mxu0 %v643
          %725 = vmatpush.bf16.msra.mxu0 %v641
          %726 = vmatpush.bf16.msra.mxu0 %v639
          %727 = vmatmul.bf16.gmra.mxu0 %v560
          %v728 = vpop.f32.mrf.mxu0
          %v729 = vadd.f32 %v587, %v728
          %v730 = vpop.f32.mrf.mxu0
          %v731 = vadd.f32 %v587, %v730
          %732 = vmatmul.bf16.gmra.mxu0 %v561
          %v733 = vpop.f32.mrf.mxu0
          %v734 = vadd.f32 %v587, %v733
          %v735 = vpop.f32.mrf.mxu0
          %v736 = vadd.f32 %v587, %v735
          %737 = vmatmul.bf16.gmra.mxu0 %v562
          %v738 = vpop.f32.mrf.mxu0
          %v739 = vadd.f32 %v587, %v738
          %v740 = vpop.f32.mrf.mxu0
          %v741 = vadd.f32 %v587, %v740
          %742 = vmatmul.bf16.gmra.mxu0 %v563
          %v743 = vpop.f32.mrf.mxu0
          %v744 = vadd.f32 %v587, %v743
          %v745 = vpop.f32.mrf.mxu0
          %v746 = vadd.f32 %v587, %v745
          %747 = vmatmul.bf16.gmra.mxu0 %v564
          %v748 = vpop.f32.mrf.mxu0
          %v749 = vadd.f32 %v587, %v748
          %v750 = vpop.f32.mrf.mxu0
          %v751 = vadd.f32 %v587, %v750
          %752 = vmatmul.bf16.gmra.mxu0 %v565
          %v753 = vpop.f32.mrf.mxu0
          %v754 = vadd.f32 %v587, %v753
          %v755 = vpop.f32.mrf.mxu0
          %v756 = vadd.f32 %v587, %v755
          %757 = vmatmul.bf16.gmra.mxu0 %v566
          %v758 = vpop.f32.mrf.mxu0
          %v759 = vadd.f32 %v587, %v758
          %v760 = vpop.f32.mrf.mxu0
          %v761 = vadd.f32 %v587, %v760
          %762 = vmatmul.bf16.gmra.mxu0 %v567
          %v763 = vpop.f32.mrf.mxu0
          %v764 = vadd.f32 %v587, %v763
          %v765 = vpop.f32.mrf.mxu0
          %v766 = vadd.f32 %v587, %v765
          %767 = vdwg.mxu0
          %v768 = vmax.f32 %v680, 0.0
          %v769 = vmax.f32 %v729, 0.0
          %v770 = vmax.f32 %v682, 0.0
          %v771 = vmax.f32 %v731, 0.0
          %v772 = vmax.f32 %v685, 0.0
          %v773 = vmax.f32 %v734, 0.0
          %v774 = vmax.f32 %v687, 0.0
          %v775 = vmax.f32 %v736, 0.0
          %v776 = vmax.f32 %v690, 0.0
          %v777 = vmax.f32 %v739, 0.0
          %v778 = vmax.f32 %v692, 0.0
          %v779 = vmax.f32 %v741, 0.0
          %v780 = vmax.f32 %v695, 0.0
          %v781 = vmax.f32 %v744, 0.0
          %v782 = vmax.f32 %v697, 0.0
          %v783 = vmax.f32 %v746, 0.0
          %v784 = vmax.f32 %v700, 0.0
          %v785 = vmax.f32 %v749, 0.0
          %v786 = vmax.f32 %v702, 0.0
          %v787 = vmax.f32 %v751, 0.0
          %v788 = vmax.f32 %v705, 0.0
          %v789 = vmax.f32 %v754, 0.0
          %v790 = vmax.f32 %v707, 0.0
          %v791 = vmax.f32 %v756, 0.0
          %v792 = vmax.f32 %v710, 0.0
          %v793 = vmax.f32 %v759, 0.0
          %v794 = vmax.f32 %v712, 0.0
          %v795 = vmax.f32 %v761, 0.0
          %v796 = vmax.f32 %v715, 0.0
          %v797 = vmax.f32 %v764, 0.0
          %v798 = vmax.f32 %v717, 0.0
          %v799 = vmax.f32 %v766, 0.0
          %v800 = vpack.c.bf16 %v769, %v768
          %v801 = vpack.c.bf16 %v771, %v770
          %v802 = vpack.c.bf16 %v773, %v772
          %v803 = vpack.c.bf16 %v775, %v774
          %v804 = vpack.c.bf16 %v777, %v776
          %v805 = vpack.c.bf16 %v779, %v778
          %v806 = vpack.c.bf16 %v781, %v780
          %v807 = vpack.c.bf16 %v783, %v782
          %v808 = vpack.c.bf16 %v785, %v784
          %v809 = vpack.c.bf16 %v787, %v786
          %v810 = vpack.c.bf16 %v789, %v788
          %v811 = vpack.c.bf16 %v791, %v790
          %v812 = vpack.c.bf16 %v793, %v792
          %v813 = vpack.c.bf16 %v795, %v794
          %v814 = vpack.c.bf16 %v797, %v796
          %v815 = vpack.c.bf16 %v799, %v798
          %816 = vst [vmem:[%s291] sm:$0xff] %v800
          %817 = vst [vmem:[%s291 + $0x8] sm:$0xff] %v801
          %818 = vst [vmem:[%s291 + $0x10] sm:$0xff] %v802
          %819 = vst [vmem:[%s291 + $0x18] sm:$0xff] %v803
          %820 = vst [vmem:[%s291 + $0x20] sm:$0xff] %v804
          %821 = vst [vmem:[%s291 + $0x28] sm:$0xff] %v805
          %822 = vst [vmem:[%s291 + $0x30] sm:$0xff] %v806
          %823 = vst [vmem:[%s291 + $0x38] sm:$0xff] %v807
          %824 = vst [vmem:[%s291 + $0x40] sm:$0xff] %v808
          %825 = vst [vmem:[%s291 + $0x48] sm:$0xff] %v809
          %826 = vst [vmem:[%s291 + $0x50] sm:$0xff] %v810
          %827 = vst [vmem:[%s291 + $0x58] sm:$0xff] %v811
          %828 = vst [vmem:[%s291 + $0x60] sm:$0xff] %v812
          %829 = vst [vmem:[%s291 + $0x68] sm:$0xff] %v813
          %830 = vst [vmem:[%s291 + $0x70] sm:$0xff] %v814
          %831 = vst [vmem:[%s291 + $0x78] sm:$0xff] %v815
        $region56: #{tpu_custom_call.1} parent=35 // pred_fallthru
          _
        %s832 = sand.u32 %s140, 1
        %s833 = scalar_lea.sflag [#allocation5], %s832
        %s834 = sand.u32 %s140, 1
        %s835 = smul.addr %s834, 128
        %s836 = scalar_lea.vmem [#allocation9], %s835
        // Predicated region
        $region57: #{tpu_custom_call.1} parent=35 // pred_check
          %p837 = pneg %p150
        $region58: #{tpu_custom_call.1} parent=35 // pred_check_branch
          %839 = sbr.rel (%p837) target = $region60
        $region59: #{tpu_custom_call.1} parent=35 // pred_region
          %s840 = smul.u32 16, %s28
          %842 = vsyncadd %s833, 0
          %s843 = smul.addr %s840, 2
          %s844 = smul.addr %s843, 4
          %s845 = scalar_lea.hbm %s4, %s844
          %s846 = sshll.u32 %s836, 4
          %s847 = int_to_ptr.vmem [resolvable:$true] %s846
          %s848 = sshll.u32 %s845, 4
          %s849 = int_to_ptr.hbm [resolvable:$true] %s848
          %854 = dma.vmem_to_hbm [thread:$0]  %s847, 2048, %s849, %s833, 128, 128, 8
        $region60: #{tpu_custom_call.1} parent=35 // pred_fallthru
          _
      $region36: #{tpu_custom_call.1} parent=5 // pred_fallthru
        _
      %p855 = scmp.le.s32.totalorder 2, %s19
      // Predicated region
      $region61: #{tpu_custom_call.1} parent=5 // pred_check
        %p856 = pneg %p855
      $region62: #{tpu_custom_call.1} parent=5 // pred_check_branch
        %858 = sbr.rel (%p856) target = $region64
      $region63: #{tpu_custom_call.1} parent=5 // pred_region
        %s859 = ssub.s32 %s19, 2
        // Predicated region
        $region65: #{tpu_custom_call.1} parent=63 // pred_check
          %p860 = pneg %p156
        $region66: #{tpu_custom_call.1} parent=63 // pred_check_branch
          %862 = sbr.rel (%p860) target = $region68
        $region67: #{tpu_custom_call.1} parent=63 // pred_region
          %s863 = sand.u32 %s141, 1
          %s864 = scalar_lea.sflag [#allocation5], %s863
          %s865 = sand.u32 %s141, 1
          %s866 = smul.addr %s865, 128
          %s867 = scalar_lea.vmem [#allocation9], %s866
          %869 = dma.done %s864, 2048
        $region68: #{tpu_custom_call.1} parent=63 // pred_fallthru
          _
      $region64: #{tpu_custom_call.1} parent=5 // pred_fallthru
        _
    $region6: #{tpu_custom_call.1} parent=1 // loop_footer
      %s23 = sadd.s32 1, %s19
    $region7: #{tpu_custom_call.1} parent=1 // loop_footer_branch
      %18 = sbr.rel target = $region3
    $region8: #{tpu_custom_call.1} parent=1 // loop_exit
      _
    %870 = vsyncpa [#allocation4], 1
    %s871 = scalar_lea.sflag [#allocation4], 1
    %872 = vsyncpa %s871, 1
    %873 = vsyncpa [#allocation7], 1
    %s874 = scalar_lea.sflag [#allocation7], 1
    %875 = vsyncpa %s874, 1
    %876 = vsyncpa [#allocation5], 1
    %s877 = scalar_lea.sflag [#allocation5], 1
    %878 = vsyncpa %s877, 1

</llo_original>
